<compile_context>
chip_gen: v5e
topology: v5e:2x2
jax: 0.10.0
libtpu: 0.0.40
codegen_flags: <defaults>
</compile_context>

<pallas_src>
from functools import partial

import jax
import jax.numpy as jnp
from jax.experimental import pallas as pl
from jax.experimental.pallas import tpu as pltpu


def _conv_block_kernel(x_ref, w0_ref, w1_ref, w2_ref, b_ref, o_ref, m_scr,
                       *, seq_len, activation, pool):
    xf = x_ref[...].astype(jnp.float32)                      # (rows, D)
    rows = xf.shape[0]

    # Local (within-sequence) time index -> per-sequence boundary masks.
    row = jax.lax.broadcasted_iota(jnp.int32, (rows, 1), 0)
    local = row % seq_len
    is_first = local == 0
    is_last = local == seq_len - 1

    # Per-sequence *circular* time shifts.  A global roll is correct except at
    # sequence boundaries, which are patched with the opposite-direction roll.
    # (jnp.roll lowers to on-chip slice+concat; the matmuls dominate cost.)
    xm1 = jnp.where(is_first, jnp.roll(xf, 1 - seq_len, axis=0),
                    jnp.roll(xf, 1, axis=0))                 # x[t-1 (mod len)]
    xp1 = jnp.where(is_last, jnp.roll(xf, seq_len - 1, axis=0),
                    jnp.roll(xf, -1, axis=0))                # x[t+1 (mod len)]

    # Circular Conv1d(k=3) as three MXU matmuls.  BatchNorm (eval) and the
    # conv bias were folded into w0/w1/w2/b by the wrapper.
    y = (jnp.dot(xm1, w0_ref[...], preferred_element_type=jnp.float32)
         + jnp.dot(xf, w1_ref[...], preferred_element_type=jnp.float32)
         + jnp.dot(xp1, w2_ref[...], preferred_element_type=jnp.float32)
         + b_ref[...])

    if activation == "gelu":
        # TODO(synk): torch.nn.GELU() defaults to the exact erf form; the tanh
        # approximation is used here (max abs deviation ~3e-4).
        a = jax.nn.gelu(y, approximate=True)
    elif activation == "relu":
        a = jnp.maximum(y, 0.0)
    elif activation == "elu":
        a = jnp.where(y > 0.0, y, jnp.exp(y) - 1.0)
    else:
        raise ValueError(f"unknown activation: {activation}")

    if not pool:
        o_ref[...] = a.astype(o_ref.dtype)
        return

    # MaxPool1d(kernel=3, stride=2, padding=1) with -inf padding, per sequence:
    #   p[j] = max(a[2j-1], a[2j], a[2j+1])
    # Compute the 3-neighbor max at every t, then keep every other row.
    neg = jnp.float32(-jnp.inf)
    a_prev = jnp.where(is_first, neg, jnp.roll(a, 1, axis=0))
    a_next = jnp.where(is_last, neg, jnp.roll(a, -1, axis=0))
    m_scr[...] = jnp.maximum(a, jnp.maximum(a_prev, a_next))
    o_ref[...] = m_scr[pl.ds(0, rows // 2, stride=2), :].astype(o_ref.dtype)


def _pick_block_seqs(n_seqs, seq_len, d_model, itemsize, max_tile_bytes):
    """Largest number of whole sequences per grid step whose (rows, D) tile is
    sublane-aligned (rows % 16 == 0 -> conv and pooled blocks 8-row aligned)
    and fits the per-tile VMEM budget."""
    best = None
    for s in range(1, n_seqs + 1):
        if n_seqs % s:
            continue
        rows = s * seq_len
        if rows % 16:
            continue
        if rows * d_model * itemsize > max_tile_bytes:
            continue
        best = s
    if best is None:
        # Single block covering the whole (small) problem; a block equal to the
        # full array shape waives the (8, 128) alignment rule.
        best = n_seqs
    return best


def conv_block_forward(x, conv_w, conv_b, bn_gamma, bn_beta, bn_mean, bn_var,
                       *, split_length_into, eps=1e-5, activation="gelu",
                       pool=True, max_tile_bytes=4 * 1024 * 1024):
    """Inference forward of spacetimeformer ConvBlock.

    x:       (batch, sl*seq_len, d_model)
    conv_w:  (d_model, d_model, 3)   Conv1d weight (out, in, k)
    conv_b:  (d_model,)              Conv1d bias
    bn_*:    (d_model,)              BatchNorm1d weight / bias / running stats
    """
    batch, total_len, d_model = x.shape
    sl = split_length_into
    assert total_len % sl == 0, "sequence length must split evenly"
    seq_len = total_len // sl
    n_seqs = batch * sl
    assert conv_w.shape == (d_model, d_model, 3)
    if pool:
        assert seq_len % 2 == 0, "pooling path assumes an even split length"
    len_out = seq_len // 2 if pool else seq_len

    f32 = jnp.float32
    # Fold BatchNorm (inference) and the conv bias into the conv weights:
    #   bn(conv(x)) = x @ (W * s) + (b_conv * s + beta - mean * s)
    s = (bn_gamma.astype(f32) / jnp.sqrt(bn_var.astype(f32) + eps))
    wk = jnp.transpose(conv_w.astype(f32), (2, 1, 0)) * s[None, None, :]  # (3, Din, Dout)
    bias = (conv_b.astype(f32) * s + bn_beta.astype(f32)
            - bn_mean.astype(f32) * s).reshape(1, d_model)

    # (batch, sl*len, D) -> (n_seqs*len, D): time on sublanes, channels on
    # lanes.  NOTE: for best store throughput d_model should be a multiple of
    # 128 in production.
    xf = x.reshape(n_seqs * seq_len, d_model)

    block_seqs = _pick_block_seqs(n_seqs, seq_len, d_model,
                                  x.dtype.itemsize, max_tile_bytes)
    rows_in = block_seqs * seq_len
    rows_out = block_seqs * len_out
    grid = (n_seqs // block_seqs,)

    kernel = partial(_conv_block_kernel, seq_len=seq_len,
                     activation=activation, pool=pool)
    out = pl.pallas_call(
        kernel,
        out_shape=jax.ShapeDtypeStruct((n_seqs * len_out, d_model), x.dtype),
        grid_spec=pltpu.PrefetchScalarGridSpec(
            num_scalar_prefetch=0,
            grid=grid,
            in_specs=[
                pl.BlockSpec((rows_in, d_model), lambda i: (i, 0)),   # x tile
                pl.BlockSpec((d_model, d_model), lambda i: (0, 0)),   # W_{k=0}
                pl.BlockSpec((d_model, d_model), lambda i: (0, 0)),   # W_{k=1}
                pl.BlockSpec((d_model, d_model), lambda i: (0, 0)),   # W_{k=2}
                pl.BlockSpec((1, d_model), lambda i: (0, 0)),         # folded bias
            ],
            out_specs=pl.BlockSpec((rows_out, d_model), lambda i: (i, 0)),
            scratch_shapes=[pltpu.VMEM((rows_in, d_model), jnp.float32)],
        ),
        compiler_params=pltpu.CompilerParams(
            dimension_semantics=("parallel",),   # independent row tiles
            vmem_limit_bytes=48 * 1024 * 1024,
        ),
    )(xf, wk[0], wk[1], wk[2], bias)

    return out.reshape(batch, sl * len_out, d_model)


conv_block = jax.jit(
    conv_block_forward,
    static_argnames=("split_length_into", "activation", "pool",
                     "max_tile_bytes"))


def _reference(x, conv_w, conv_b, bn_gamma, bn_beta, bn_mean, bn_var,
               *, split_length_into, eps=1e-5):
    """Pure-JAX mirror of the PyTorch forward (eval BatchNorm, tanh GELU)."""
    batch, total_len, d_model = x.shape
    sl = split_length_into
    seq_len = total_len // sl
    xr = x.reshape(batch * sl, seq_len, d_model).astype(jnp.float32)
    xp = jnp.concatenate([xr[:, -1:], xr, xr[:, :1]], axis=1)   # circular pad
    y = conv_b.astype(jnp.float32)[None, None, :]
    for k in range(3):
        y = y + jnp.einsum("ntc,oc->nto", xp[:, k:k + seq_len],
                           conv_w[:, :, k].astype(jnp.float32),
                           precision=jax.lax.Precision.HIGHEST)
    s = bn_gamma / jnp.sqrt(bn_var + eps)
    y = y * s + (bn_beta - bn_mean * s)
    a = jax.nn.gelu(y, approximate=True)
    ap = jnp.pad(a, ((0, 0), (1, 1), (0, 0)), constant_values=-jnp.inf)
    lo = seq_len // 2
    p = jnp.maximum(jnp.maximum(ap[:, 0:seq_len:2], ap[:, 1:seq_len + 1:2]),
                    ap[:, 2:seq_len + 2:2])
    return p.reshape(batch, sl * lo, d_model)


if __name__ == "__main__":
    batch, sl, seq_len, d_model = 2, 2, 16, 32
    total_len = sl * seq_len

    key = jax.random.PRNGKey(0)
    kx, kw, kb, kg, kbt, km, kv = jax.random.split(key, 7)
    x = jax.random.normal(kx, (batch, total_len, d_model), dtype=jnp.float32)
    conv_w = 0.2 * jax.random.normal(kw, (d_model, d_model, 3), dtype=jnp.float32)
    conv_b = 0.1 * jax.random.normal(kb, (d_model,), dtype=jnp.float32)
    bn_gamma = 1.0 + 0.1 * jax.random.normal(kg, (d_model,), dtype=jnp.float32)
    bn_beta = 0.1 * jax.random.normal(kbt, (d_model,), dtype=jnp.float32)
    bn_mean = 0.1 * jax.random.normal(km, (d_model,), dtype=jnp.float32)
    bn_var = 1.0 + 0.5 * jax.random.uniform(kv, (d_model,), dtype=jnp.float32)

    out = conv_block(x, conv_w, conv_b, bn_gamma, bn_beta, bn_mean, bn_var,
                     split_length_into=sl)
    out = jax.block_until_ready(out)

    ref = _reference(x, conv_w, conv_b, bn_gamma, bn_beta, bn_mean, bn_var,
                     split_length_into=sl)
    assert out.shape == (batch, sl * (seq_len // 2), d_model), out.shape
    # Tolerance leaves margin for MXU f32 accumulation-order differences.
    assert jnp.allclose(out, ref, atol=2e-3, rtol=2e-3), (
        "mismatch vs reference, max abs err = "
        f"{float(jnp.max(jnp.abs(out - ref)))}")

    print("KERNEL_OK")
</pallas_src>

<mosaic_0001>
module attributes {stable_mosaic.version = 11 : i64} {
  func.func @_conv_block_kernel(%arg0: i32, %arg1: memref<64x32xf32, #tpu.memory_space<vmem>>, %arg2: memref<32x32xf32, #tpu.memory_space<vmem>>, %arg3: memref<32x32xf32, #tpu.memory_space<vmem>>, %arg4: memref<32x32xf32, #tpu.memory_space<vmem>>, %arg5: memref<1x32xf32, #tpu.memory_space<vmem>>, %arg6: memref<32x32xf32, #tpu.memory_space<vmem>>, %arg7: memref<64x32xf32, #tpu.memory_space<vmem>>) attributes {dimension_semantics = [#tpu.dimension_semantics<parallel>], iteration_bounds = array<i64: 1>, scalar_prefetch = 0 : i64, scratch_operands = 1 : i64, tpu.core_type = #tpu.core_type<tc>, window_params = [{transform_indices = @transform_0, window_bounds = array<i64: 64, 32>}, {pipeline_mode = #tpu.pipeline_mode<synchronous>, transform_indices = @transform_1, window_bounds = array<i64: 32, 32>}, {pipeline_mode = #tpu.pipeline_mode<synchronous>, transform_indices = @transform_2, window_bounds = array<i64: 32, 32>}, {pipeline_mode = #tpu.pipeline_mode<synchronous>, transform_indices = @transform_3, window_bounds = array<i64: 32, 32>}, {pipeline_mode = #tpu.pipeline_mode<synchronous>, transform_indices = @transform_4, window_bounds = array<i64: 1, 32>}, {transform_indices = @transform_5, window_bounds = array<i64: 32, 32>}]} {
    %c0 = arith.constant 0 : index
    %c0_0 = arith.constant 0 : index
    %0 = vector.load %arg1[%c0, %c0_0] : memref<64x32xf32, #tpu.memory_space<vmem>>, vector<64x32xf32>
    %1 = tpu.iota {dimensions = array<i32: 0>} : vector<64x1xi32>
    %c16_i32 = arith.constant 16 : i32
    %c0_i32 = arith.constant 0 : i32
    %2 = arith.cmpi eq, %c16_i32, %c0_i32 : i32
    %c1_i32 = arith.constant 1 : i32
    %3 = arith.select %2, %c1_i32, %c16_i32 : i32
    %4 = vector.broadcast %3 : i32 to vector<64x1xi32>
    %5 = arith.remsi %1, %4 : vector<64x1xi32>
    %c0_i32_1 = arith.constant 0 : i32
    %6 = vector.broadcast %c0_i32_1 : i32 to vector<64x1xi32>
    %7 = arith.cmpi ne, %5, %6 : vector<64x1xi32>
    %c0_i32_2 = arith.constant 0 : i32
    %8 = vector.broadcast %c0_i32_2 : i32 to vector<64x1xi32>
    %9 = arith.cmpi slt, %5, %8 : vector<64x1xi32>
    %c0_i32_3 = arith.constant 0 : i32
    %10 = arith.cmpi slt, %3, %c0_i32_3 : i32
    %11 = vector.broadcast %10 : i1 to vector<64x1xi1>
    %12 = vector.broadcast %11 : vector<64x1xi1> to vector<64x1xi1>
    %13 = arith.xori %9, %12 : vector<64x1xi1>
    %14 = arith.andi %13, %7 : vector<64x1xi1>
    %15 = vector.broadcast %3 : i32 to vector<64x1xi32>
    %16 = arith.addi %5, %15 : vector<64x1xi32>
    %17 = arith.select %14, %16, %5 : vector<64x1xi1>, vector<64x1xi32>
    %c0_i32_4 = arith.constant 0 : i32
    %18 = vector.broadcast %c0_i32_4 : i32 to vector<64x1xi32>
    %19 = arith.cmpi eq, %17, %18 : vector<64x1xi32>
    %c15_i32 = arith.constant 15 : i32
    %20 = vector.broadcast %c15_i32 : i32 to vector<64x1xi32>
    %21 = arith.cmpi eq, %17, %20 : vector<64x1xi32>
    %22 = vector.extract_strided_slice %0 {offsets = [15, 0], sizes = [49, 32], strides = [1, 1]} : vector<64x32xf32> to vector<49x32xf32>
    %23 = vector.extract_strided_slice %0 {offsets = [0, 0], sizes = [15, 32], strides = [1, 1]} : vector<64x32xf32> to vector<15x32xf32>
    %24 = tpu.concatenate %22, %23 in 0 : vector<49x32xf32>, vector<15x32xf32> -> vector<64x32xf32>
    %25 = vector.extract_strided_slice %0 {offsets = [63, 0], sizes = [1, 32], strides = [1, 1]} : vector<64x32xf32> to vector<1x32xf32>
    %26 = vector.extract_strided_slice %0 {offsets = [0, 0], sizes = [63, 32], strides = [1, 1]} : vector<64x32xf32> to vector<63x32xf32>
    %27 = tpu.concatenate %25, %26 in 0 : vector<1x32xf32>, vector<63x32xf32> -> vector<64x32xf32>
    %28 = vector.shape_cast %19 : vector<64x1xi1> to vector<64x1xi1>
    %29 = vector.broadcast %28 : vector<64x1xi1> to vector<64x32xi1>
    %30 = arith.select %29, %24, %27 : vector<64x32xi1>, vector<64x32xf32>
    %31 = vector.extract_strided_slice %0 {offsets = [49, 0], sizes = [15, 32], strides = [1, 1]} : vector<64x32xf32> to vector<15x32xf32>
    %32 = vector.extract_strided_slice %0 {offsets = [0, 0], sizes = [49, 32], strides = [1, 1]} : vector<64x32xf32> to vector<49x32xf32>
    %33 = tpu.concatenate %31, %32 in 0 : vector<15x32xf32>, vector<49x32xf32> -> vector<64x32xf32>
    %34 = vector.extract_strided_slice %0 {offsets = [1, 0], sizes = [63, 32], strides = [1, 1]} : vector<64x32xf32> to vector<63x32xf32>
    %35 = vector.extract_strided_slice %0 {offsets = [0, 0], sizes = [1, 32], strides = [1, 1]} : vector<64x32xf32> to vector<1x32xf32>
    %36 = tpu.concatenate %34, %35 in 0 : vector<63x32xf32>, vector<1x32xf32> -> vector<64x32xf32>
    %37 = vector.shape_cast %21 : vector<64x1xi1> to vector<64x1xi1>
    %38 = vector.broadcast %37 : vector<64x1xi1> to vector<64x32xi1>
    %39 = arith.select %38, %33, %36 : vector<64x32xi1>, vector<64x32xf32>
    %c0_5 = arith.constant 0 : index
    %c0_6 = arith.constant 0 : index
    %40 = vector.load %arg2[%c0_5, %c0_6] : memref<32x32xf32, #tpu.memory_space<vmem>>, vector<32x32xf32>
    %cst = arith.constant dense<0.000000e+00> : vector<64x32xf32>
    %41 = tpu.matmul %30, %40, %cst {dimension_numbers = #tpu.dot_dimension_numbers<[1], [0], [0], [1], [0, 0, 1, 1], [], []>} : vector<64x32xf32>, vector<32x32xf32>, vector<64x32xf32> -> vector<64x32xf32>
    %c0_7 = arith.constant 0 : index
    %c0_8 = arith.constant 0 : index
    %42 = vector.load %arg3[%c0_7, %c0_8] : memref<32x32xf32, #tpu.memory_space<vmem>>, vector<32x32xf32>
    %cst_9 = arith.constant dense<0.000000e+00> : vector<64x32xf32>
    %43 = tpu.matmul %0, %42, %cst_9 {dimension_numbers = #tpu.dot_dimension_numbers<[1], [0], [0], [1], [0, 0, 1, 1], [], []>} : vector<64x32xf32>, vector<32x32xf32>, vector<64x32xf32> -> vector<64x32xf32>
    %44 = arith.addf %41, %43 : vector<64x32xf32>
    %c0_10 = arith.constant 0 : index
    %c0_11 = arith.constant 0 : index
    %45 = vector.load %arg4[%c0_10, %c0_11] : memref<32x32xf32, #tpu.memory_space<vmem>>, vector<32x32xf32>
    %cst_12 = arith.constant dense<0.000000e+00> : vector<64x32xf32>
    %46 = tpu.matmul %39, %45, %cst_12 {dimension_numbers = #tpu.dot_dimension_numbers<[1], [0], [0], [1], [0, 0, 1, 1], [], []>} : vector<64x32xf32>, vector<32x32xf32>, vector<64x32xf32> -> vector<64x32xf32>
    %47 = arith.addf %44, %46 : vector<64x32xf32>
    %c0_13 = arith.constant 0 : index
    %c0_14 = arith.constant 0 : index
    %48 = vector.load %arg5[%c0_13, %c0_14] : memref<1x32xf32, #tpu.memory_space<vmem>>, vector<1x32xf32>
    %49 = vector.broadcast %48 : vector<1x32xf32> to vector<64x32xf32>
    %50 = arith.addf %47, %49 : vector<64x32xf32>
    %51 = arith.mulf %50, %50 : vector<64x32xf32>
    %52 = arith.mulf %50, %51 : vector<64x32xf32>
    %cst_15 = arith.constant 4.471500e-02 : f32
    %53 = vector.broadcast %cst_15 : f32 to vector<64x32xf32>
    %54 = arith.mulf %53, %52 : vector<64x32xf32>
    %55 = arith.addf %50, %54 : vector<64x32xf32>
    %cst_16 = arith.constant 0.797884583 : f32
    %56 = vector.broadcast %cst_16 : f32 to vector<64x32xf32>
    %57 = arith.mulf %56, %55 : vector<64x32xf32>
    %58 = math.tanh %57 : vector<64x32xf32>
    %cst_17 = arith.constant 1.000000e+00 : f32
    %59 = vector.broadcast %cst_17 : f32 to vector<64x32xf32>
    %60 = arith.addf %59, %58 : vector<64x32xf32>
    %cst_18 = arith.constant 5.000000e-01 : f32
    %61 = vector.broadcast %cst_18 : f32 to vector<64x32xf32>
    %62 = arith.mulf %61, %60 : vector<64x32xf32>
    %63 = arith.mulf %50, %62 : vector<64x32xf32>
    %64 = vector.extract_strided_slice %63 {offsets = [63, 0], sizes = [1, 32], strides = [1, 1]} : vector<64x32xf32> to vector<1x32xf32>
    %65 = vector.extract_strided_slice %63 {offsets = [0, 0], sizes = [63, 32], strides = [1, 1]} : vector<64x32xf32> to vector<63x32xf32>
    %66 = tpu.concatenate %64, %65 in 0 : vector<1x32xf32>, vector<63x32xf32> -> vector<64x32xf32>
    %cst_19 = arith.constant 0xFF800000 : f32
    %67 = vector.shape_cast %19 : vector<64x1xi1> to vector<64x1xi1>
    %68 = vector.broadcast %67 : vector<64x1xi1> to vector<64x32xi1>
    %69 = vector.broadcast %cst_19 : f32 to vector<64x32xf32>
    %70 = arith.select %68, %69, %66 : vector<64x32xi1>, vector<64x32xf32>
    %71 = vector.extract_strided_slice %63 {offsets = [1, 0], sizes = [63, 32], strides = [1, 1]} : vector<64x32xf32> to vector<63x32xf32>
    %72 = vector.extract_strided_slice %63 {offsets = [0, 0], sizes = [1, 32], strides = [1, 1]} : vector<64x32xf32> to vector<1x32xf32>
    %73 = tpu.concatenate %71, %72 in 0 : vector<63x32xf32>, vector<1x32xf32> -> vector<64x32xf32>
    %cst_20 = arith.constant 0xFF800000 : f32
    %74 = vector.shape_cast %21 : vector<64x1xi1> to vector<64x1xi1>
    %75 = vector.broadcast %74 : vector<64x1xi1> to vector<64x32xi1>
    %76 = vector.broadcast %cst_20 : f32 to vector<64x32xf32>
    %77 = arith.select %75, %76, %73 : vector<64x32xi1>, vector<64x32xf32>
    %78 = arith.maximumf %70, %77 : vector<64x32xf32>
    %79 = arith.maximumf %63, %78 : vector<64x32xf32>
    %c0_21 = arith.constant 0 : index
    %c0_22 = arith.constant 0 : index
    %80 = vector.load %arg7[%c0_21, %c0_22] : memref<64x32xf32, #tpu.memory_space<vmem>>, vector<64x32xf32>
    tpu.vector_store %arg7[%c0_21, %c0_22], %79 {strides = array<i32>} : memref<64x32xf32, #tpu.memory_space<vmem>>, vector<64x32xf32>,
    %c0_23 = arith.constant 0 : index
    %c0_24 = arith.constant 0 : index
    %81 = tpu.strided_load %arg7[%c0_23, %c0_24] {strides = array<i32: 2, 1>} : memref<64x32xf32, #tpu.memory_space<vmem>>, vector<32x32xf32>
    %c0_25 = arith.constant 0 : index
    %c0_26 = arith.constant 0 : index
    %82 = vector.load %arg6[%c0_25, %c0_26] : memref<32x32xf32, #tpu.memory_space<vmem>>, vector<32x32xf32>
    tpu.vector_store %arg6[%c0_25, %c0_26], %81 {strides = array<i32>} : memref<32x32xf32, #tpu.memory_space<vmem>>, vector<32x32xf32>,
    return
  }
  func.func @transform_0(%arg0: i32) -> (i32, i32) {
    %c0_i32 = arith.constant 0 : i32
    %c0_i32_0 = arith.constant 0 : i32
    return %arg0, %c0_i32 : i32, i32
  }
  func.func @transform_1(%arg0: i32) -> (i32, i32) {
    %c0_i32 = arith.constant 0 : i32
    %c0_i32_0 = arith.constant 0 : i32
    %c0_i32_1 = arith.constant 0 : i32
    return %c0_i32, %c0_i32_0 : i32, i32
  }
  func.func @transform_2(%arg0: i32) -> (i32, i32) {
    %c0_i32 = arith.constant 0 : i32
    %c0_i32_0 = arith.constant 0 : i32
    %c0_i32_1 = arith.constant 0 : i32
    return %c0_i32, %c0_i32_0 : i32, i32
  }
  func.func @transform_3(%arg0: i32) -> (i32, i32) {
    %c0_i32 = arith.constant 0 : i32
    %c0_i32_0 = arith.constant 0 : i32
    %c0_i32_1 = arith.constant 0 : i32
    return %c0_i32, %c0_i32_0 : i32, i32
  }
  func.func @transform_4(%arg0: i32) -> (i32, i32) {
    %c0_i32 = arith.constant 0 : i32
    %c0_i32_0 = arith.constant 0 : i32
    %c0_i32_1 = arith.constant 0 : i32
    return %c0_i32, %c0_i32_0 : i32, i32
  }
  func.func @transform_5(%arg0: i32) -> (i32, i32) {
    %c0_i32 = arith.constant 0 : i32
    %c0_i32_0 = arith.constant 0 : i32
    return %arg0, %c0_i32 : i32, i32
  }
}

</mosaic_0001>

<llo_original>
// kernel: conv_block_forward.1
$region0: #{conv_block_forward.1}
  #allocation0 [shape = 'u32[]', space=smem, size = 0x4, offset = 0x4, fixed_abs, tag = 'smem constant byte address 0x4 - core index']
  #allocation1 [shape = 'u32[72,128]{1,0:T(1,128)}', space=vmem, size = 0x9000, scoped, tag = 'internal scratch']
  #allocation2 [shape = 'f32[64,32]{1,0:T(8,128)}', space=vmem, size = 0x8000, scoped, tag = 'scratch operand']
  %s0 = inlined_call_operand.vmem [shape: f32[64,32], index: 0, kind: input, shape index: {}]
  %s1 = inlined_call_operand.vmem [shape: f32[32,32], index: 1, kind: input, shape index: {}]
  %s2 = inlined_call_operand.vmem [shape: f32[32,32], index: 2, kind: input, shape index: {}]
  %s3 = inlined_call_operand.vmem [shape: f32[32,32], index: 3, kind: input, shape index: {}]
  %s4 = inlined_call_operand.vmem [shape: f32[1,32], index: 4, kind: input, shape index: {}]
  %s5 = inlined_call_operand.hbm [shape: f32[32,32], index: 5, kind: output, shape index: {}]
  %s6 = sld [smem:[#allocation0]]
  $region30: #{conv_block_forward.1} parent=0
    _
  %s8 = ssub.s32 1, %s6
  %s9 = scalar_select 0, %s8, %s6
  $region1: #{conv_block_forward.1} parent=0
    #allocation3 [shape = 'u8[16384]{0}', space=vmem, size = 0x4000, scoped, tag = 'output window, operand 0, single buffered']
    #allocation4 [shape = 's32[1]{0}', space=sflag, size = 0x4, scoped, tag = 'scoped memory for conv_block_forward.1']
    %10 = vsyncpa [#allocation4], 0
    // Predicated region
    $region2: #{conv_block_forward.1} parent=1 // pred_check
      _
    $region3: #{conv_block_forward.1} parent=1 // pred_check_branch
      %12 = sbr.rel (0) target = $region5
    $region4: #{conv_block_forward.1} parent=1 // pred_region
      _
    $region5: #{conv_block_forward.1} parent=1 // pred_fallthru
      _
    // Predicated region
    $region6: #{conv_block_forward.1} parent=1 // pred_check
      _
    $region7: #{conv_block_forward.1} parent=1 // pred_check_branch
      %14 = sbr.rel (0) target = $region9
    $region8: #{conv_block_forward.1} parent=1 // pred_region
      _
    $region9: #{conv_block_forward.1} parent=1 // pred_fallthru
      _
    // Predicated region
    $region10: #{conv_block_forward.1} parent=1 // pred_check
      _
    $region11: #{conv_block_forward.1} parent=1 // pred_check_branch
      %16 = sbr.rel (0) target = $region13
    $region12: #{conv_block_forward.1} parent=1 // pred_region
      _
    $region13: #{conv_block_forward.1} parent=1 // pred_fallthru
      _
    // Predicated region
    $region14: #{conv_block_forward.1} parent=1 // pred_check
      _
    $region15: #{conv_block_forward.1} parent=1 // pred_check_branch
      %18 = sbr.rel (0) target = $region17
    $region16: #{conv_block_forward.1} parent=1 // pred_region
      _
    $region17: #{conv_block_forward.1} parent=1 // pred_fallthru
      _
    // Predicated region
    $region18: #{conv_block_forward.1} parent=1 // pred_check
      _
    $region19: #{conv_block_forward.1} parent=1 // pred_check_branch
      %20 = sbr.rel (0) target = $region21
    $region20: #{conv_block_forward.1} parent=1 // pred_region
      _
    $region21: #{conv_block_forward.1} parent=1 // pred_fallthru
      _
    %v21 = vld [vmem:[%s0] sm:$0xff]
    %v22 = vld [vmem:[%s0 + $0x8] sm:$0xff]
    %v23 = vld [vmem:[%s0 + $0x10] sm:$0xff]
    %v24 = vld [vmem:[%s0 + $0x18] sm:$0xff]
    %v25 = vld [vmem:[%s0 + $0x20] sm:$0xff]
    %v26 = vld [vmem:[%s0 + $0x28] sm:$0xff]
    %v27 = vld [vmem:[%s0 + $0x30] sm:$0xff]
    %v28 = vld [vmem:[%s0 + $0x38] sm:$0xff]
    %v29 = vlaneseq
    %v30 = vshrl.u32 %v29, 7
    %v31 = vadd.s32 %v30, 8
    %v32 = vadd.s32 %v30, 16
    %v33 = vadd.s32 %v30, 24
    %v34 = vadd.s32 %v30, 32
    %v35 = vadd.s32 %v30, 40
    %v36 = vadd.s32 %v30, 48
    %v37 = vadd.s32 %v30, 56
    %vm38 = vcmp.lt.s32.totalorder %v30, 0
    %v39 = vsub.s32 0, %v30
    %v40 = vsel %vm38, %v39, %v30
    %v41 = vshrl.u32 %v40, 4
    %v42 = vand.u32 %v40, 15
    %v43 = vsub.s32 0, %v42
    %v44 = vsel %vm38, %v43, %v42
    %vm45 = vcmp.lt.s32.totalorder %v31, 0
    %v46 = vsub.s32 0, %v31
    %v47 = vsel %vm45, %v46, %v31
    %v48 = vshrl.u32 %v47, 4
    %v49 = vand.u32 %v47, 15
    %v50 = vsub.s32 0, %v49
    %v51 = vsel %vm45, %v50, %v49
    %vm52 = vcmp.lt.s32.totalorder %v32, 0
    %v53 = vsub.s32 0, %v32
    %v54 = vsel %vm52, %v53, %v32
    %v55 = vshrl.u32 %v54, 4
    %v56 = vand.u32 %v54, 15
    %v57 = vsub.s32 0, %v56
    %v58 = vsel %vm52, %v57, %v56
    %vm59 = vcmp.lt.s32.totalorder %v33, 0
    %v60 = vsub.s32 0, %v33
    %v61 = vsel %vm59, %v60, %v33
    %v62 = vshrl.u32 %v61, 4
    %v63 = vand.u32 %v61, 15
    %v64 = vsub.s32 0, %v63
    %v65 = vsel %vm59, %v64, %v63
    %vm66 = vcmp.lt.s32.totalorder %v34, 0
    %v67 = vsub.s32 0, %v34
    %v68 = vsel %vm66, %v67, %v34
    %v69 = vshrl.u32 %v68, 4
    %v70 = vand.u32 %v68, 15
    %v71 = vsub.s32 0, %v70
    %v72 = vsel %vm66, %v71, %v70
    %vm73 = vcmp.lt.s32.totalorder %v35, 0
    %v74 = vsub.s32 0, %v35
    %v75 = vsel %vm73, %v74, %v35
    %v76 = vshrl.u32 %v75, 4
    %v77 = vand.u32 %v75, 15
    %v78 = vsub.s32 0, %v77
    %v79 = vsel %vm73, %v78, %v77
    %vm80 = vcmp.lt.s32.totalorder %v36, 0
    %v81 = vsub.s32 0, %v36
    %v82 = vsel %vm80, %v81, %v36
    %v83 = vshrl.u32 %v82, 4
    %v84 = vand.u32 %v82, 15
    %v85 = vsub.s32 0, %v84
    %v86 = vsel %vm80, %v85, %v84
    %vm87 = vcmp.lt.s32.totalorder %v37, 0
    %v88 = vsub.s32 0, %v37
    %v89 = vsel %vm87, %v88, %v37
    %v90 = vshrl.u32 %v89, 4
    %v91 = vand.u32 %v89, 15
    %v92 = vsub.s32 0, %v91
    %v93 = vsel %vm87, %v92, %v91
    %vm94 = vcmp.ne.s32.totalorder %v44, 0
    %vm95 = vcmp.ne.s32.totalorder %v51, 0
    %vm96 = vcmp.ne.s32.totalorder %v58, 0
    %vm97 = vcmp.ne.s32.totalorder %v65, 0
    %vm98 = vcmp.ne.s32.totalorder %v72, 0
    %vm99 = vcmp.ne.s32.totalorder %v79, 0
    %vm100 = vcmp.ne.s32.totalorder %v86, 0
    %vm101 = vcmp.ne.s32.totalorder %v93, 0
    %vm102 = vcmp.lt.s32.totalorder %v44, 0
    %vm103 = vcmp.lt.s32.totalorder %v51, 0
    %vm104 = vcmp.lt.s32.totalorder %v58, 0
    %vm105 = vcmp.lt.s32.totalorder %v65, 0
    %vm106 = vcmp.lt.s32.totalorder %v72, 0
    %vm107 = vcmp.lt.s32.totalorder %v79, 0
    %vm108 = vcmp.lt.s32.totalorder %v86, 0
    %vm109 = vcmp.lt.s32.totalorder %v93, 0
    %vm110 = vmand %vm102, %vm94
    %vm111 = vmand %vm103, %vm95
    %vm112 = vmand %vm104, %vm96
    %vm113 = vmand %vm105, %vm97
    %vm114 = vmand %vm106, %vm98
    %vm115 = vmand %vm107, %vm99
    %vm116 = vmand %vm108, %vm100
    %vm117 = vmand %vm109, %vm101
    %v118 = vadd.s32 %v44, 16
    %v119 = vadd.s32 %v51, 16
    %v120 = vadd.s32 %v58, 16
    %v121 = vadd.s32 %v65, 16
    %v122 = vadd.s32 %v72, 16
    %v123 = vadd.s32 %v79, 16
    %v124 = vadd.s32 %v86, 16
    %v125 = vadd.s32 %v93, 16
    %v126 = vsel %vm110, %v118, %v44
    %v127 = vsel %vm111, %v119, %v51
    %v128 = vsel %vm112, %v120, %v58
    %v129 = vsel %vm113, %v121, %v65
    %v130 = vsel %vm114, %v122, %v72
    %v131 = vsel %vm115, %v123, %v79
    %v132 = vsel %vm116, %v124, %v86
    %v133 = vsel %vm117, %v125, %v93
    %vm134 = vcmp.eq.s32.totalorder %v126, 0
    %vm135 = vcmp.eq.s32.totalorder %v127, 0
    %vm136 = vcmp.eq.s32.totalorder %v128, 0
    %vm137 = vcmp.eq.s32.totalorder %v129, 0
    %vm138 = vcmp.eq.s32.totalorder %v130, 0
    %vm139 = vcmp.eq.s32.totalorder %v131, 0
    %vm140 = vcmp.eq.s32.totalorder %v132, 0
    %vm141 = vcmp.eq.s32.totalorder %v133, 0
    %vm142 = vcmp.eq.s32.totalorder %v126, 15
    %vm143 = vcmp.eq.s32.totalorder %v127, 15
    %vm144 = vcmp.eq.s32.totalorder %v128, 15
    %vm145 = vcmp.eq.s32.totalorder %v129, 15
    %vm146 = vcmp.eq.s32.totalorder %v130, 15
    %vm147 = vcmp.eq.s32.totalorder %v131, 15
    %vm148 = vcmp.eq.s32.totalorder %v132, 15
    %vm149 = vcmp.eq.s32.totalorder %v133, 15
    %vm157 = vcmask 1040384
    %v158 = vrot.slane %v22, 7
    %v159 = vrot.slane %v23, 7
    %v160 = vsel %vm157, %v158, %v159
    %v161 = vrot.slane %v24, 7
    %v162 = vsel %vm157, %v159, %v161
    %v163 = vrot.slane %v25, 7
    %v164 = vsel %vm157, %v161, %v163
    %v165 = vrot.slane %v26, 7
    %v166 = vsel %vm157, %v163, %v165
    %v167 = vrot.slane %v27, 7
    %v168 = vsel %vm157, %v165, %v167
    %v169 = vrot.slane %v28, 7
    %v170 = vsel %vm157, %v167, %v169
    %v179 = vrot.slane %v21, 7
    %v180 = vsel %vm157, %v179, %v158
    %v183 = vsel %vm157, %v169, %v179
    %v184 = vsel %vm134, 1, 0
    %v185 = vsel %vm135, 1, 0
    %v186 = vsel %vm136, 1, 0
    %v187 = vsel %vm137, 1, 0
    %v188 = vsel %vm138, 1, 0
    %v189 = vsel %vm139, 1, 0
    %v190 = vsel %vm140, 1, 0
    %v191 = vsel %vm141, 1, 0
    %vm192 = vcmp.eq.s32.totalorder %v184, 1
    %vm193 = vcmp.eq.s32.totalorder %v185, 1
    %vm194 = vcmp.eq.s32.totalorder %v186, 1
    %vm195 = vcmp.eq.s32.totalorder %v187, 1
    %vm196 = vcmp.eq.s32.totalorder %v188, 1
    %vm197 = vcmp.eq.s32.totalorder %v189, 1
    %vm198 = vcmp.eq.s32.totalorder %v190, 1
    %vm199 = vcmp.eq.s32.totalorder %v191, 1
    %v200 = vsel %vm192, %v160, %v183
    %v201 = vsel %vm193, %v162, %v180
    %v202 = vsel %vm194, %v164, %v160
    %v203 = vsel %vm195, %v166, %v162
    %v204 = vsel %vm196, %v168, %v164
    %v205 = vsel %vm197, %v170, %v166
    %v206 = vsel %vm198, %v183, %v168
    %v207 = vsel %vm199, %v180, %v170
    %vm208 = vcmask 1046528
    %v209 = vrot.slane %v27, 1
    %v210 = vrot.slane %v28, 1
    %v211 = vsel %vm208, %v209, %v210
    %v214 = vrot.slane %v21, 1
    %v215 = vrot.slane %v22, 1
    %v216 = vsel %vm208, %v214, %v215
    %v217 = vrot.slane %v23, 1
    %v218 = vsel %vm208, %v215, %v217
    %v219 = vrot.slane %v24, 1
    %v220 = vsel %vm208, %v217, %v219
    %v221 = vrot.slane %v25, 1
    %v222 = vsel %vm208, %v219, %v221
    %v223 = vrot.slane %v26, 1
    %v224 = vsel %vm208, %v221, %v223
    %v225 = vsel %vm208, %v223, %v209
    %v233 = vsel %vm208, %v210, %v214
    %v234 = vsel %vm142, 1, 0
    %v235 = vsel %vm143, 1, 0
    %v236 = vsel %vm144, 1, 0
    %v237 = vsel %vm145, 1, 0
    %v238 = vsel %vm146, 1, 0
    %v239 = vsel %vm147, 1, 0
    %v240 = vsel %vm148, 1, 0
    %v241 = vsel %vm149, 1, 0
    %vm242 = vcmp.eq.s32.totalorder %v234, 1
    %vm243 = vcmp.eq.s32.totalorder %v235, 1
    %vm244 = vcmp.eq.s32.totalorder %v236, 1
    %vm245 = vcmp.eq.s32.totalorder %v237, 1
    %vm246 = vcmp.eq.s32.totalorder %v238, 1
    %vm247 = vcmp.eq.s32.totalorder %v239, 1
    %vm248 = vcmp.eq.s32.totalorder %v240, 1
    %vm249 = vcmp.eq.s32.totalorder %v241, 1
    %v250 = vsel %vm242, %v211, %v216
    %v251 = vsel %vm243, %v233, %v218
    %v252 = vsel %vm244, %v216, %v220
    %v253 = vsel %vm245, %v218, %v222
    %v254 = vsel %vm246, %v220, %v224
    %v255 = vsel %vm247, %v222, %v225
    %v256 = vsel %vm248, %v224, %v211
    %v257 = vsel %vm249, %v225, %v233
    %v258 = vld [vmem:[%s1] sm:$0xff]
    %v259 = vld [vmem:[%s1 + $0x8] sm:$0xff]
    %v260 = vld [vmem:[%s1 + $0x10] sm:$0xff]
    %v261 = vld [vmem:[%s1 + $0x18] sm:$0xff]
    %v262 = vld [vmem:[%s2] sm:$0xff]
    %v263 = vld [vmem:[%s2 + $0x8] sm:$0xff]
    %v264 = vld [vmem:[%s2 + $0x10] sm:$0xff]
    %v265 = vld [vmem:[%s2 + $0x18] sm:$0xff]
    %vm266 = vcmask 261120
    %v267 = vsel %vm266, %v21, 0
    %v269 = vsel %vm266, %v22, 0
    %v271 = vsel %vm266, %v23, 0
    %v273 = vsel %vm266, %v24, 0
    %v275 = vsel %vm266, %v25, 0
    %v277 = vsel %vm266, %v26, 0
    %v279 = vsel %vm266, %v27, 0
    %v281 = vsel %vm266, %v28, 0
    %283 = vmatpush.msra.mxu0 0.0
    %284 = vmatpush.msra.mxu0 0.0
    %285 = vmatpush.msra.mxu0 0.0
    %286 = vmatpush.msra.mxu0 0.0
    %287 = vmatpush.msra.mxu0 0.0
    %288 = vmatpush.msra.mxu0 0.0
    %289 = vmatpush.msra.mxu0 0.0
    %290 = vmatpush.msra.mxu0 0.0
    %291 = vmatpush.msra.mxu0 0.0
    %292 = vmatpush.msra.mxu0 0.0
    %293 = vmatpush.msra.mxu0 0.0
    %294 = vmatpush.msra.mxu0 0.0
    %295 = vmatpush.msra.mxu0 %v265
    %296 = vmatpush.msra.mxu0 %v264
    %297 = vmatpush.msra.mxu0 %v263
    %298 = vmatpush.msra.mxu0 %v262
    %299 = vmatmul.f32.gmra.mxu0 %v267
    %v300 = vpop.f32.mrf.mxu0
    %v301 = vadd.f32 0.0, %v300
    %302 = vmatmul.f32.gmra.mxu0 %v269
    %v303 = vpop.f32.mrf.mxu0
    %v304 = vadd.f32 0.0, %v303
    %305 = vmatmul.f32.gmra.mxu0 %v271
    %v306 = vpop.f32.mrf.mxu0
    %v307 = vadd.f32 0.0, %v306
    %308 = vmatmul.f32.gmra.mxu0 %v273
    %v309 = vpop.f32.mrf.mxu0
    %v310 = vadd.f32 0.0, %v309
    %311 = vmatmul.f32.gmra.mxu0 %v275
    %v312 = vpop.f32.mrf.mxu0
    %v313 = vadd.f32 0.0, %v312
    %314 = vmatmul.f32.gmra.mxu0 %v277
    %v315 = vpop.f32.mrf.mxu0
    %v316 = vadd.f32 0.0, %v315
    %317 = vmatmul.f32.gmra.mxu0 %v279
    %v318 = vpop.f32.mrf.mxu0
    %v319 = vadd.f32 0.0, %v318
    %320 = vmatmul.f32.gmra.mxu0 %v281
    %v321 = vpop.f32.mrf.mxu0
    %v322 = vadd.f32 0.0, %v321
    %323 = vdwg.mxu0
    %v325 = vsel %vm266, %v200, 0
    %v328 = vsel %vm266, %v201, 0
    %v331 = vsel %vm266, %v202, 0
    %v334 = vsel %vm266, %v203, 0
    %v337 = vsel %vm266, %v204, 0
    %v340 = vsel %vm266, %v205, 0
    %v343 = vsel %vm266, %v206, 0
    %v346 = vsel %vm266, %v207, 0
    %348 = vmatpush.msra.mxu0 0.0
    %349 = vmatpush.msra.mxu0 0.0
    %350 = vmatpush.msra.mxu0 0.0
    %351 = vmatpush.msra.mxu0 0.0
    %352 = vmatpush.msra.mxu0 0.0
    %353 = vmatpush.msra.mxu0 0.0
    %354 = vmatpush.msra.mxu0 0.0
    %355 = vmatpush.msra.mxu0 0.0
    %356 = vmatpush.msra.mxu0 0.0
    %357 = vmatpush.msra.mxu0 0.0
    %358 = vmatpush.msra.mxu0 0.0
    %359 = vmatpush.msra.mxu0 0.0
    %360 = vmatpush.msra.mxu0 %v261
    %361 = vmatpush.msra.mxu0 %v260
    %362 = vmatpush.msra.mxu0 %v259
    %363 = vmatpush.msra.mxu0 %v258
    %364 = vmatmul.f32.gmra.mxu0 %v325
    %v365 = vpop.f32.mrf.mxu0
    %v366 = vadd.f32 %v301, %v365
    %367 = vmatmul.f32.gmra.mxu0 %v328
    %v368 = vpop.f32.mrf.mxu0
    %v369 = vadd.f32 %v304, %v368
    %370 = vmatmul.f32.gmra.mxu0 %v331
    %v371 = vpop.f32.mrf.mxu0
    %v372 = vadd.f32 %v307, %v371
    %373 = vmatmul.f32.gmra.mxu0 %v334
    %v374 = vpop.f32.mrf.mxu0
    %v375 = vadd.f32 %v310, %v374
    %376 = vmatmul.f32.gmra.mxu0 %v337
    %v377 = vpop.f32.mrf.mxu0
    %v378 = vadd.f32 %v313, %v377
    %379 = vmatmul.f32.gmra.mxu0 %v340
    %v380 = vpop.f32.mrf.mxu0
    %v381 = vadd.f32 %v316, %v380
    %382 = vmatmul.f32.gmra.mxu0 %v343
    %v383 = vpop.f32.mrf.mxu0
    %v384 = vadd.f32 %v319, %v383
    %385 = vmatmul.f32.gmra.mxu0 %v346
    %v386 = vpop.f32.mrf.mxu0
    %v387 = vadd.f32 %v322, %v386
    %388 = vdwg.mxu0
    %v389 = vld [vmem:[%s3] sm:$0xff]
    %v390 = vld [vmem:[%s3 + $0x8] sm:$0xff]
    %v391 = vld [vmem:[%s3 + $0x10] sm:$0xff]
    %v392 = vld [vmem:[%s3 + $0x18] sm:$0xff]
    %v394 = vsel %vm266, %v250, 0
    %v397 = vsel %vm266, %v251, 0
    %v400 = vsel %vm266, %v252, 0
    %v403 = vsel %vm266, %v253, 0
    %v406 = vsel %vm266, %v254, 0
    %v409 = vsel %vm266, %v255, 0
    %v412 = vsel %vm266, %v256, 0
    %v415 = vsel %vm266, %v257, 0
    %417 = vmatpush.msra.mxu0 0.0
    %418 = vmatpush.msra.mxu0 0.0
    %419 = vmatpush.msra.mxu0 0.0
    %420 = vmatpush.msra.mxu0 0.0
    %421 = vmatpush.msra.mxu0 0.0
    %422 = vmatpush.msra.mxu0 0.0
    %423 = vmatpush.msra.mxu0 0.0
    %424 = vmatpush.msra.mxu0 0.0
    %425 = vmatpush.msra.mxu0 0.0
    %426 = vmatpush.msra.mxu0 0.0
    %427 = vmatpush.msra.mxu0 0.0
    %428 = vmatpush.msra.mxu0 0.0
    %429 = vmatpush.msra.mxu0 %v392
    %430 = vmatpush.msra.mxu0 %v391
    %431 = vmatpush.msra.mxu0 %v390
    %432 = vmatpush.msra.mxu0 %v389
    %433 = vmatmul.f32.gmra.mxu0 %v394
    %v434 = vpop.f32.mrf.mxu0
    %v435 = vadd.f32 0.0, %v434
    %436 = vmatmul.f32.gmra.mxu0 %v397
    %v437 = vpop.f32.mrf.mxu0
    %v438 = vadd.f32 0.0, %v437
    %439 = vmatmul.f32.gmra.mxu0 %v400
    %v440 = vpop.f32.mrf.mxu0
    %v441 = vadd.f32 0.0, %v440
    %442 = vmatmul.f32.gmra.mxu0 %v403
    %v443 = vpop.f32.mrf.mxu0
    %v444 = vadd.f32 0.0, %v443
    %445 = vmatmul.f32.gmra.mxu0 %v406
    %v446 = vpop.f32.mrf.mxu0
    %v447 = vadd.f32 0.0, %v446
    %448 = vmatmul.f32.gmra.mxu0 %v409
    %v449 = vpop.f32.mrf.mxu0
    %v450 = vadd.f32 0.0, %v449
    %451 = vmatmul.f32.gmra.mxu0 %v412
    %v452 = vpop.f32.mrf.mxu0
    %v453 = vadd.f32 0.0, %v452
    %454 = vmatmul.f32.gmra.mxu0 %v415
    %v455 = vpop.f32.mrf.mxu0
    %v456 = vadd.f32 0.0, %v455
    %457 = vdwg.mxu0
    %v458 = vadd.f32 %v366, %v435
    %v459 = vadd.f32 %v369, %v438
    %v460 = vadd.f32 %v372, %v441
    %v461 = vadd.f32 %v375, %v444
    %v462 = vadd.f32 %v378, %v447
    %v463 = vadd.f32 %v381, %v450
    %v464 = vadd.f32 %v384, %v453
    %v465 = vadd.f32 %v387, %v456
    %v466 = vld [vmem:[%s4] sm:$0x1]
    %v468 = vperm.slane %v466, 0
    %v470 = vadd.f32 %v458, %v468
    %v471 = vadd.f32 %v459, %v468
    %v472 = vadd.f32 %v460, %v468
    %v473 = vadd.f32 %v461, %v468
    %v474 = vadd.f32 %v462, %v468
    %v475 = vadd.f32 %v463, %v468
    %v476 = vadd.f32 %v464, %v468
    %v477 = vadd.f32 %v465, %v468
    %v478 = vmul.f32 %v470, %v470
    %v479 = vmul.f32 %v471, %v471
    %v480 = vmul.f32 %v472, %v472
    %v481 = vmul.f32 %v473, %v473
    %v482 = vmul.f32 %v474, %v474
    %v483 = vmul.f32 %v475, %v475
    %v484 = vmul.f32 %v476, %v476
    %v485 = vmul.f32 %v477, %v477
    %v486 = vmul.f32 %v470, %v478
    %v487 = vmul.f32 %v471, %v479
    %v488 = vmul.f32 %v472, %v480
    %v489 = vmul.f32 %v473, %v481
    %v490 = vmul.f32 %v474, %v482
    %v491 = vmul.f32 %v475, %v483
    %v492 = vmul.f32 %v476, %v484
    %v493 = vmul.f32 %v477, %v485
    %v494 = vmul.f32 %v486, 0.044715
    %v495 = vmul.f32 %v487, 0.044715
    %v496 = vmul.f32 %v488, 0.044715
    %v497 = vmul.f32 %v489, 0.044715
    %v498 = vmul.f32 %v490, 0.044715
    %v499 = vmul.f32 %v491, 0.044715
    %v500 = vmul.f32 %v492, 0.044715
    %v501 = vmul.f32 %v493, 0.044715
    %v502 = vadd.f32 %v470, %v494
    %v503 = vadd.f32 %v471, %v495
    %v504 = vadd.f32 %v472, %v496
    %v505 = vadd.f32 %v473, %v497
    %v506 = vadd.f32 %v474, %v498
    %v507 = vadd.f32 %v475, %v499
    %v508 = vadd.f32 %v476, %v500
    %v509 = vadd.f32 %v477, %v501
    %v510 = vmul.f32 %v502, 0.7978846
    %v511 = vmul.f32 %v503, 0.7978846
    %v512 = vmul.f32 %v504, 0.7978846
    %v513 = vmul.f32 %v505, 0.7978846
    %v514 = vmul.f32 %v506, 0.7978846
    %v515 = vmul.f32 %v507, 0.7978846
    %v516 = vmul.f32 %v508, 0.7978846
    %v517 = vmul.f32 %v509, 0.7978846
    %v518 = vtanh.pop %v510
    %v519 = vtanh.pop %v511
    %v520 = vtanh.pop %v512
    %v521 = vtanh.pop %v513
    %v522 = vtanh.pop %v514
    %v523 = vtanh.pop %v515
    %v524 = vtanh.pop %v516
    %v525 = vtanh.pop %v517
    %v526 = vadd.f32 %v518, 1.0
    %v527 = vadd.f32 %v519, 1.0
    %v528 = vadd.f32 %v520, 1.0
    %v529 = vadd.f32 %v521, 1.0
    %v530 = vadd.f32 %v522, 1.0
    %v531 = vadd.f32 %v523, 1.0
    %v532 = vadd.f32 %v524, 1.0
    %v533 = vadd.f32 %v525, 1.0
    %v534 = vmul.f32 %v526, 0.5
    %v535 = vmul.f32 %v527, 0.5
    %v536 = vmul.f32 %v528, 0.5
    %v537 = vmul.f32 %v529, 0.5
    %v538 = vmul.f32 %v530, 0.5
    %v539 = vmul.f32 %v531, 0.5
    %v540 = vmul.f32 %v532, 0.5
    %v541 = vmul.f32 %v533, 0.5
    %v542 = vmul.f32 %v470, %v534
    %v543 = vmul.f32 %v471, %v535
    %v544 = vmul.f32 %v472, %v536
    %v545 = vmul.f32 %v473, %v537
    %v546 = vmul.f32 %v474, %v538
    %v547 = vmul.f32 %v475, %v539
    %v548 = vmul.f32 %v476, %v540
    %v549 = vmul.f32 %v477, %v541
    %v551 = vrot.slane %v549, 7
    %v560 = vrot.slane %v542, 7
    %v561 = vrot.slane %v543, 7
    %v562 = vsel %vm157, %v560, %v561
    %v563 = vrot.slane %v544, 7
    %v564 = vsel %vm157, %v561, %v563
    %v565 = vrot.slane %v545, 7
    %v566 = vsel %vm157, %v563, %v565
    %v567 = vrot.slane %v546, 7
    %v568 = vsel %vm157, %v565, %v567
    %v569 = vrot.slane %v547, 7
    %v570 = vsel %vm157, %v567, %v569
    %v571 = vrot.slane %v548, 7
    %v572 = vsel %vm157, %v569, %v571
    %v573 = vsel %vm157, %v571, %v551
    %v582 = vsel %vm157, %v551, %v560
    %v583 = vsel %vm192, -inf, %v582
    %v584 = vsel %vm193, -inf, %v562
    %v585 = vsel %vm194, -inf, %v564
    %v586 = vsel %vm195, -inf, %v566
    %v587 = vsel %vm196, -inf, %v568
    %v588 = vsel %vm197, -inf, %v570
    %v589 = vsel %vm198, -inf, %v572
    %v590 = vsel %vm199, -inf, %v573
    %v591 = vrot.slane %v542, 1
    %v592 = vrot.slane %v543, 1
    %v593 = vsel %vm208, %v591, %v592
    %v594 = vrot.slane %v544, 1
    %v595 = vsel %vm208, %v592, %v594
    %v596 = vrot.slane %v545, 1
    %v597 = vsel %vm208, %v594, %v596
    %v598 = vrot.slane %v546, 1
    %v599 = vsel %vm208, %v596, %v598
    %v600 = vrot.slane %v547, 1
    %v601 = vsel %vm208, %v598, %v600
    %v602 = vrot.slane %v548, 1
    %v603 = vsel %vm208, %v600, %v602
    %v604 = vrot.slane %v549, 1
    %v605 = vsel %vm208, %v602, %v604
    %v615 = vsel %vm208, %v604, %v591
    %v616 = vsel %vm242, -inf, %v593
    %v617 = vsel %vm243, -inf, %v595
    %v618 = vsel %vm244, -inf, %v597
    %v619 = vsel %vm245, -inf, %v599
    %v620 = vsel %vm246, -inf, %v601
    %v621 = vsel %vm247, -inf, %v603
    %v622 = vsel %vm248, -inf, %v605
    %v623 = vsel %vm249, -inf, %v615
    %v624 = vmax.f32 %v583, %v616
    %v625 = vmax.f32 %v584, %v617
    %v626 = vmax.f32 %v585, %v618
    %v627 = vmax.f32 %v586, %v619
    %v628 = vmax.f32 %v587, %v620
    %v629 = vmax.f32 %v588, %v621
    %v630 = vmax.f32 %v589, %v622
    %v631 = vmax.f32 %v590, %v623
    %v632 = vmax.f32 %v542, %v624
    %v633 = vmax.f32 %v543, %v625
    %v634 = vmax.f32 %v544, %v626
    %v635 = vmax.f32 %v545, %v627
    %v636 = vmax.f32 %v546, %v628
    %v637 = vmax.f32 %v547, %v629
    %v638 = vmax.f32 %v548, %v630
    %v639 = vmax.f32 %v549, %v631
    %640 = vst.msk [vmem:[#allocation2] sm:$0xff] %vm266, %v632
    %641 = vst.msk [vmem:[#allocation2 + $0x8] sm:$0xff] %vm266, %v633
    %642 = vst.msk [vmem:[#allocation2 + $0x10] sm:$0xff] %vm266, %v634
    %643 = vst.msk [vmem:[#allocation2 + $0x18] sm:$0xff] %vm266, %v635
    %644 = vst.msk [vmem:[#allocation2 + $0x20] sm:$0xff] %vm266, %v636
    %645 = vst.msk [vmem:[#allocation2 + $0x28] sm:$0xff] %vm266, %v637
    %646 = vst.msk [vmem:[#allocation2 + $0x30] sm:$0xff] %vm266, %v638
    %647 = vst.msk [vmem:[#allocation2 + $0x38] sm:$0xff] %vm266, %v639
    %v648 = vld [vmem:[#allocation2] ss:$2 sm:$0xff]
    %s649 = scalar_lea.vmem [#allocation2], 16
    %v650 = vld [vmem:[%s649] ss:$2 sm:$0xff]
    %s651 = scalar_lea.vmem [#allocation2], 32
    %v652 = vld [vmem:[%s651] ss:$2 sm:$0xff]
    %s653 = scalar_lea.vmem [#allocation2], 48
    %v654 = vld [vmem:[%s653] ss:$2 sm:$0xff]
    %655 = vst.msk [vmem:[#allocation3] sm:$0xff] %vm266, %v648
    %656 = vst.msk [vmem:[#allocation3 + $0x8] sm:$0xff] %vm266, %v650
    %657 = vst.msk [vmem:[#allocation3 + $0x10] sm:$0xff] %vm266, %v652
    %658 = vst.msk [vmem:[#allocation3 + $0x18] sm:$0xff] %vm266, %v654
    // Predicated region
    $region22: #{conv_block_forward.1} parent=1 // pred_check
      _
    $region23: #{conv_block_forward.1} parent=1 // pred_check_branch
      %660 = sbr.rel (0) target = $region25
    $region24: #{conv_block_forward.1} parent=1 // pred_region
      %662 = vsyncadd [#allocation4], 0
      %s663 = sshll.u32 [#allocation3], 4
      %s664 = int_to_ptr.vmem [resolvable:$true] %s663
      %s665 = sshll.u32 %s5, 4
      %s666 = int_to_ptr.hbm [resolvable:$true] %s665
      %671 = dma.vmem_to_hbm [thread:$0]  %s664, 512, %s666, [#allocation4], 128, 128, 8
    $region25: #{conv_block_forward.1} parent=1 // pred_fallthru
      _
    // Predicated region
    $region26: #{conv_block_forward.1} parent=1 // pred_check
      _
    $region27: #{conv_block_forward.1} parent=1 // pred_check_branch
      %673 = sbr.rel (0) target = $region29
    $region28: #{conv_block_forward.1} parent=1 // pred_region
      %675 = dma.done [#allocation4], 512
    $region29: #{conv_block_forward.1} parent=1 // pred_fallthru
      _
    %676 = vsyncpa [#allocation4], 1

</llo_original>
